<compile_context>
chip_gen: v6e
topology: v6e:2x2x1
jax: 0.10.0
libtpu: 0.0.40
codegen_flags: <defaults>
</compile_context>

<pallas_src>
import functools

import numpy as np
import jax
import jax.numpy as jnp
from jax.experimental import pallas as pl
from jax.experimental.pallas import tpu as pltpu


def _round_up(v, m):
    return ((v + m - 1) // m) * m


# --------------------------------------------------------------------------- #
# Kernel 1: GCN hyperedge features fused with the lin_att / lin projections    #
# --------------------------------------------------------------------------- #
def _gcn_proj_kernel(a_ref, x_ref, w_gcn_ref, b_gcn_ref, w_att_ref, w_lin_ref,
                     att_ref, lin_ref):
    # hyper = (A_norm @ x) @ W_gcn + b_gcn   (A_norm already deg^-1/2 scaled)
    agg = jnp.dot(a_ref[...], x_ref[...], preferred_element_type=jnp.float32)
    hyper = jnp.dot(agg, w_gcn_ref[...],
                    preferred_element_type=jnp.float32) + b_gcn_ref[...]
    # lin_att(hyper) and lin(hyper), emitted in bf16 for kernel 2's MXU path.
    att_ref[...] = jnp.dot(hyper, w_att_ref[...],
                           preferred_element_type=jnp.float32
                           ).astype(att_ref.dtype)
    lin_ref[...] = jnp.dot(hyper, w_lin_ref[...],
                           preferred_element_type=jnp.float32
                           ).astype(lin_ref.dtype)


# --------------------------------------------------------------------------- #
# Kernel 2: MAGAT multiplicative attention on the reversed edges               #
# --------------------------------------------------------------------------- #
def _magat_kernel(bias_ref, x_ref, att_t_ref, lin_ref, b_out_ref, out_ref, *,
                  heads, f_in, c_out, hc, hc_pad):
    x_t = x_ref[...]                                    # (TM, F) bf16 targets
    bias = bias_ref[...].astype(jnp.float32)            # 0 on edges/diag, -1e9 off
    parts = []
    for h in range(heads):                               # heads: small & static
        att_h = att_t_ref[h * f_in:(h + 1) * f_in, :]    # (F, N) bf16
        s = jnp.dot(x_t, att_h, preferred_element_type=jnp.float32)   # (TM, N)
        s = jnp.where(s > 0, s, 0.2 * s) + bias          # leaky_relu + edge mask
        smax = jnp.max(s, axis=-1, keepdims=True)
        e = jnp.exp(s - smax)                            # masked entries -> 0
        denom = jnp.sum(e, axis=-1, keepdims=True)       # >= exp(0) (self loop)
        agg = jnp.dot(e.astype(lin_ref.dtype),
                      lin_ref[:, h * c_out:(h + 1) * c_out],
                      preferred_element_type=jnp.float32)              # (TM, C)
        parts.append(agg * (1.0 / denom))                # exact normalisation
    if hc_pad > hc:
        parts.append(jnp.zeros((x_t.shape[0], hc_pad - hc), jnp.float32))
    out_ref[...] = jnp.concatenate(parts, axis=1) + b_out_ref[...]


# --------------------------------------------------------------------------- #
# Wrapper                                                                      #
# --------------------------------------------------------------------------- #
def hmagat2_forward(x, edge_index, w_gcn, b_gcn, w_lin, w_att, b_out, *,
                    heads, tile_m=128, vmem_limit_bytes=48 * 1024 * 1024):
    n, f_in = x.shape
    hc = w_lin.shape[1]                  # heads * out_channels
    c_out = hc // heads
    hf = w_att.shape[1]                  # heads * in_channels
    n_pad = _round_up(max(n, 1), tile_m)
    hc_pad = _round_up(hc, 128)
    hf_pad = _round_up(hf, 128)

    src = jnp.asarray(edge_index[0])
    dst = jnp.asarray(edge_index[1])

    # GCN adjacency (rows = dst, cols = src) with the symmetric deg^-1/2 norm
    # folded in, stored in bf16 so the K=N aggregation matmul is pure bf16.
    deg = jnp.zeros((n_pad,), jnp.float32).at[dst].add(1.0)
    dinv = jnp.where(deg > 0, jax.lax.rsqrt(deg), 0.0)
    a = jnp.zeros((n_pad, n_pad), jnp.float32).at[dst, src].set(1.0)
    a_norm = (a * dinv[:, None] * dinv[None, :]).astype(jnp.bfloat16)

    # MAGAT mask on the REVERSED edges, self loops baked in over the FULL padded
    # range (keeps padded-row softmax denominators nonzero), shipped as an
    # additive softmax bias: 0 where attention is allowed, -1e9 elsewhere.
    adj_rev = jnp.zeros((n_pad, n_pad), jnp.bool_).at[src, dst].set(True)
    allowed = adj_rev | jnp.eye(n_pad, dtype=jnp.bool_)
    mask_bias = jnp.where(allowed, 0.0, -1e9).astype(jnp.bfloat16)

    x_p = (jnp.zeros((n_pad, f_in), jnp.float32)
           .at[:n, :].set(x.astype(jnp.float32))).astype(jnp.bfloat16)
    b_gcn2 = jnp.asarray(b_gcn, jnp.float32).reshape(1, f_in)
    w_gcn_f = jnp.asarray(w_gcn, jnp.float32)
    w_att_p = jnp.zeros((f_in, hf_pad), jnp.float32).at[:, :hf].set(
        jnp.asarray(w_att, jnp.float32))
    w_lin_p = jnp.zeros((f_in, hc_pad), jnp.float32).at[:, :hc].set(
        jnp.asarray(w_lin, jnp.float32))
    b_out_p = jnp.zeros((1, hc_pad), jnp.float32).at[:, :hc].set(
        jnp.asarray(b_out, jnp.float32).reshape(1, hc))

    grid = (n_pad // tile_m,)
    cparams = pltpu.CompilerParams(dimension_semantics=("parallel",),
                                   vmem_limit_bytes=vmem_limit_bytes)

    # ---- kernel 1: hyperedge features + fused projections --------------------
    flops1 = (2 * n_pad * n_pad * f_in
              + 2 * n_pad * f_in * (f_in + hf_pad + hc_pad))
    bytes1 = 2 * n_pad * n_pad + 2 * n_pad * (f_in + hf_pad + hc_pad)
    att, lin_hyper = pl.pallas_call(
        _gcn_proj_kernel,
        out_shape=(jax.ShapeDtypeStruct((n_pad, hf_pad), jnp.bfloat16),
                   jax.ShapeDtypeStruct((n_pad, hc_pad), jnp.bfloat16)),
        grid=grid,
        in_specs=[
            pl.BlockSpec((tile_m, n_pad), lambda i: (i, 0)),   # A_norm row tile
            pl.BlockSpec((n_pad, f_in), lambda i: (0, 0)),     # x (full)
            pl.BlockSpec((f_in, f_in), lambda i: (0, 0)),      # W_gcn
            pl.BlockSpec((1, f_in), lambda i: (0, 0)),         # b_gcn
            pl.BlockSpec((f_in, hf_pad), lambda i: (0, 0)),    # W_att (padded)
            pl.BlockSpec((f_in, hc_pad), lambda i: (0, 0)),    # W_lin (padded)
        ],
        out_specs=(pl.BlockSpec((tile_m, hf_pad), lambda i: (i, 0)),
                   pl.BlockSpec((tile_m, hc_pad), lambda i: (i, 0))),
        compiler_params=cparams,
        cost_estimate=pl.CostEstimate(flops=flops1, transcendentals=0,
                                      bytes_accessed=bytes1),
    )(a_norm, x_p, w_gcn_f, b_gcn2, w_att_p, w_lin_p)

    # Transpose the attention operand once (XLA) so kernel 2's score matmul is a
    # plain (TM, F) @ (F, N) MXU call with no in-kernel transposes.
    att_t = att.T                                          # (hf_pad, n_pad) bf16

    # ---- kernel 2: MAGAT multiplicative attention -----------------------------
    kernel2 = functools.partial(_magat_kernel, heads=heads, f_in=f_in,
                                c_out=c_out, hc=hc, hc_pad=hc_pad)
    flops2 = (2 * heads * n_pad * n_pad * f_in
              + 2 * heads * n_pad * n_pad * c_out
              + 6 * heads * n_pad * n_pad)
    bytes2 = (2 * n_pad * n_pad + 2 * n_pad * (f_in + hf_pad + hc_pad)
              + 4 * n_pad * hc_pad)
    out_pad = pl.pallas_call(
        kernel2,
        out_shape=jax.ShapeDtypeStruct((n_pad, hc_pad), jnp.float32),
        grid=grid,
        in_specs=[
            pl.BlockSpec((tile_m, n_pad), lambda i: (i, 0)),   # mask bias tile
            pl.BlockSpec((tile_m, f_in), lambda i: (i, 0)),    # x row tile
            pl.BlockSpec((hf_pad, n_pad), lambda i: (0, 0)),   # lin_att(hyper)^T
            pl.BlockSpec((n_pad, hc_pad), lambda i: (0, 0)),   # lin(hyper)
            pl.BlockSpec((1, hc_pad), lambda i: (0, 0)),       # bias (padded)
        ],
        out_specs=pl.BlockSpec((tile_m, hc_pad), lambda i: (i, 0)),
        compiler_params=cparams,
        cost_estimate=pl.CostEstimate(flops=flops2,
                                      transcendentals=heads * n_pad * n_pad,
                                      bytes_accessed=bytes2),
    )(mask_bias, x_p, att_t, lin_hyper, b_out_p)

    return out_pad[:n, :hc]


# --------------------------------------------------------------------------- #
# Pure-JAX (f32) edge-list reference mirroring the PyG scatter semantics       #
# --------------------------------------------------------------------------- #
def ref_hmagat2(x, edge_index, w_gcn, b_gcn, w_lin, w_att, b_out, *, heads):
    n, f_in = x.shape
    c_out = w_lin.shape[1] // heads
    src = jnp.asarray(edge_index[0])
    dst = jnp.asarray(edge_index[1])

    # GCNConv (add_self_loops=False, symmetric norm on in-degree, zero bias)
    h = x @ w_gcn
    deg = jnp.zeros(n, jnp.float32).at[dst].add(1.0)
    dinv = jnp.where(deg > 0, jax.lax.rsqrt(deg), 0.0)
    norm = dinv[src] * dinv[dst]
    hyper = jnp.zeros((n, f_in), jnp.float32).at[dst].add(norm[:, None] * h[src])
    hyper = hyper + jnp.asarray(b_gcn).reshape(1, f_in)

    # MAGAT on the REVERSED edges with x pair = (hyperedge_attr, x):
    src_np = np.asarray(edge_index[0])
    dst_np = np.asarray(edge_index[1])
    src_r, dst_r = dst_np, src_np                # reversed edge  j -> i
    keep = src_r != dst_r                        # remove self loops
    sr = np.concatenate([src_r[keep], np.arange(n, dtype=np.int32)])
    ds = np.concatenate([dst_r[keep], np.arange(n, dtype=np.int32)])
    sr_j, ds_j = jnp.asarray(sr), jnp.asarray(ds)

    att = (hyper @ w_att).reshape(n, heads, f_in)    # lin_att(hyperedge_attr)
    lin = (hyper @ w_lin).reshape(n, heads, c_out)   # lin(hyperedge_attr)
    s = jnp.einsum('ehf,ef->eh', att[sr_j], x[ds_j])
    s = jnp.where(s > 0, s, 0.2 * s)
    smax = jnp.full((n, heads), -jnp.inf).at[ds_j].max(s)
    e = jnp.exp(s - smax[ds_j])
    den = jnp.zeros((n, heads)).at[ds_j].add(e)
    alpha = e / den[ds_j]
    out = jnp.zeros((n, heads, c_out)).at[ds_j].add(alpha[:, :, None] * lin[sr_j])
    return out.reshape(n, heads * c_out) + jnp.asarray(b_out).reshape(1, -1)


if __name__ == "__main__":
    N, F_IN, C_OUT, HEADS = 8, 16, 32, 2

    key = jax.random.PRNGKey(0)
    kx, kg, kl, ka = jax.random.split(key, 4)

    x = jax.random.normal(kx, (N, F_IN), jnp.float32)

    # Deterministic simple directed graph: ring plus chords, no self loops.
    src = np.concatenate([np.arange(N), np.arange(N)])
    dst = np.concatenate([(np.arange(N) + 1) % N, (np.arange(N) + 3) % N])
    edge_index = np.stack([src, dst]).astype(np.int32)   # (2, E)

    def glorot(k, shape):
        lim = float(np.sqrt(6.0 / (shape[0] + shape[1])))
        return jax.random.uniform(k, shape, jnp.float32, -lim, lim)

    w_gcn = glorot(kg, (F_IN, F_IN))                    # GCNConv.lin  (in -> in)
    w_lin = glorot(kl, (F_IN, HEADS * C_OUT))           # MAGAT.lin    (in -> H*C)
    w_att = glorot(ka, (F_IN, HEADS * F_IN))            # MAGAT.lin_att(in -> H*in)
    b_gcn = jnp.zeros((1, F_IN), jnp.float32)           # zeros() init
    b_out = jnp.zeros((1, HEADS * C_OUT), jnp.float32)  # zeros() init

    out = hmagat2_forward(x, edge_index, w_gcn, b_gcn, w_lin, w_att, b_out,
                          heads=HEADS)
    out = jax.block_until_ready(out)

    ref = ref_hmagat2(x, edge_index, w_gcn, b_gcn, w_lin, w_att, b_out,
                      heads=HEADS)
    ref = jax.block_until_ready(ref)

    assert out.shape == (N, HEADS * C_OUT)
    # Kernel feeds its big matmuls bf16 operands (normalised adjacency, node
    # features, lin_att/lin projections, attention probabilities) with f32
    # accumulation; the reference is pure f32, so allow bf16-level tolerance.
    assert np.allclose(np.asarray(out), np.asarray(ref), atol=3e-2, rtol=3e-2)
    print("KERNEL_OK")
</pallas_src>

<mosaic_0001>
module attributes {stable_mosaic.version = 11 : i64} {
  func.func @_gcn_proj_kernel(%arg0: i32, %arg1: memref<128x128xbf16, #tpu.memory_space<vmem>>, %arg2: memref<128x16xbf16, #tpu.memory_space<vmem>>, %arg3: memref<16x16xf32, #tpu.memory_space<vmem>>, %arg4: memref<1x16xf32, #tpu.memory_space<vmem>>, %arg5: memref<16x128xf32, #tpu.memory_space<vmem>>, %arg6: memref<16x128xf32, #tpu.memory_space<vmem>>, %arg7: memref<128x128xbf16, #tpu.memory_space<vmem>>, %arg8: memref<128x128xbf16, #tpu.memory_space<vmem>>) attributes {dimension_semantics = [#tpu.dimension_semantics<parallel>], iteration_bounds = array<i64: 1>, scalar_prefetch = 0 : i64, scratch_operands = 0 : i64, tpu.core_type = #tpu.core_type<tc>, window_params = [{transform_indices = @transform_0, window_bounds = array<i64: 128, 128>}, {pipeline_mode = #tpu.pipeline_mode<synchronous>, transform_indices = @transform_1, window_bounds = array<i64: 128, 16>}, {pipeline_mode = #tpu.pipeline_mode<synchronous>, transform_indices = @transform_2, window_bounds = array<i64: 16, 16>}, {pipeline_mode = #tpu.pipeline_mode<synchronous>, transform_indices = @transform_3, window_bounds = array<i64: 1, 16>}, {pipeline_mode = #tpu.pipeline_mode<synchronous>, transform_indices = @transform_4, window_bounds = array<i64: 16, 128>}, {pipeline_mode = #tpu.pipeline_mode<synchronous>, transform_indices = @transform_5, window_bounds = array<i64: 16, 128>}, {transform_indices = @transform_6, window_bounds = array<i64: 128, 128>}, {transform_indices = @transform_7, window_bounds = array<i64: 128, 128>}]} {
    %c0 = arith.constant 0 : index
    %c0_0 = arith.constant 0 : index
    %0 = vector.load %arg1[%c0, %c0_0] : memref<128x128xbf16, #tpu.memory_space<vmem>>, vector<128x128xbf16>
    %c0_1 = arith.constant 0 : index
    %c0_2 = arith.constant 0 : index
    %1 = vector.load %arg2[%c0_1, %c0_2] : memref<128x16xbf16, #tpu.memory_space<vmem>>, vector<128x16xbf16>
    %cst = arith.constant dense<0.000000e+00> : vector<128x16xf32>
    %2 = tpu.matmul %0, %1, %cst {dimension_numbers = #tpu.dot_dimension_numbers<[1], [0], [0], [1], [0, 0, 1, 1], [], []>} : vector<128x128xbf16>, vector<128x16xbf16>, vector<128x16xf32> -> vector<128x16xf32>
    %c0_3 = arith.constant 0 : index
    %c0_4 = arith.constant 0 : index
    %3 = vector.load %arg3[%c0_3, %c0_4] : memref<16x16xf32, #tpu.memory_space<vmem>>, vector<16x16xf32>
    %cst_5 = arith.constant dense<0.000000e+00> : vector<128x16xf32>
    %4 = tpu.matmul %2, %3, %cst_5 {dimension_numbers = #tpu.dot_dimension_numbers<[1], [0], [0], [1], [0, 0, 1, 1], [], []>} : vector<128x16xf32>, vector<16x16xf32>, vector<128x16xf32> -> vector<128x16xf32>
    %c0_6 = arith.constant 0 : index
    %c0_7 = arith.constant 0 : index
    %5 = vector.load %arg4[%c0_6, %c0_7] : memref<1x16xf32, #tpu.memory_space<vmem>>, vector<1x16xf32>
    %6 = vector.broadcast %5 : vector<1x16xf32> to vector<128x16xf32>
    %7 = arith.addf %4, %6 : vector<128x16xf32>
    %c0_8 = arith.constant 0 : index
    %c0_9 = arith.constant 0 : index
    %8 = vector.load %arg5[%c0_8, %c0_9] : memref<16x128xf32, #tpu.memory_space<vmem>>, vector<16x128xf32>
    %cst_10 = arith.constant dense<0.000000e+00> : vector<128x128xf32>
    %9 = tpu.matmul %7, %8, %cst_10 {dimension_numbers = #tpu.dot_dimension_numbers<[1], [0], [0], [1], [0, 0, 1, 1], [], []>} : vector<128x16xf32>, vector<16x128xf32>, vector<128x128xf32> -> vector<128x128xf32>
    %10 = arith.truncf %9 : vector<128x128xf32> to vector<128x128xbf16>
    %c0_11 = arith.constant 0 : index
    %c0_12 = arith.constant 0 : index
    %11 = vector.load %arg7[%c0_11, %c0_12] : memref<128x128xbf16, #tpu.memory_space<vmem>>, vector<128x128xbf16>
    tpu.vector_store %arg7[%c0_11, %c0_12], %10 {strides = array<i32>} : memref<128x128xbf16, #tpu.memory_space<vmem>>, vector<128x128xbf16>,
    %c0_13 = arith.constant 0 : index
    %c0_14 = arith.constant 0 : index
    %12 = vector.load %arg6[%c0_13, %c0_14] : memref<16x128xf32, #tpu.memory_space<vmem>>, vector<16x128xf32>
    %cst_15 = arith.constant dense<0.000000e+00> : vector<128x128xf32>
    %13 = tpu.matmul %7, %12, %cst_15 {dimension_numbers = #tpu.dot_dimension_numbers<[1], [0], [0], [1], [0, 0, 1, 1], [], []>} : vector<128x16xf32>, vector<16x128xf32>, vector<128x128xf32> -> vector<128x128xf32>
    %14 = arith.truncf %13 : vector<128x128xf32> to vector<128x128xbf16>
    %c0_16 = arith.constant 0 : index
    %c0_17 = arith.constant 0 : index
    %15 = vector.load %arg8[%c0_16, %c0_17] : memref<128x128xbf16, #tpu.memory_space<vmem>>, vector<128x128xbf16>
    tpu.vector_store %arg8[%c0_16, %c0_17], %14 {strides = array<i32>} : memref<128x128xbf16, #tpu.memory_space<vmem>>, vector<128x128xbf16>,
    return
  }
  func.func @transform_0(%arg0: i32) -> (i32, i32) {
    %c0_i32 = arith.constant 0 : i32
    %c0_i32_0 = arith.constant 0 : i32
    return %arg0, %c0_i32 : i32, i32
  }
  func.func @transform_1(%arg0: i32) -> (i32, i32) {
    %c0_i32 = arith.constant 0 : i32
    %c0_i32_0 = arith.constant 0 : i32
    %c0_i32_1 = arith.constant 0 : i32
    return %c0_i32, %c0_i32_0 : i32, i32
  }
  func.func @transform_2(%arg0: i32) -> (i32, i32) {
    %c0_i32 = arith.constant 0 : i32
    %c0_i32_0 = arith.constant 0 : i32
    %c0_i32_1 = arith.constant 0 : i32
    return %c0_i32, %c0_i32_0 : i32, i32
  }
  func.func @transform_3(%arg0: i32) -> (i32, i32) {
    %c0_i32 = arith.constant 0 : i32
    %c0_i32_0 = arith.constant 0 : i32
    %c0_i32_1 = arith.constant 0 : i32
    return %c0_i32, %c0_i32_0 : i32, i32
  }
  func.func @transform_4(%arg0: i32) -> (i32, i32) {
    %c0_i32 = arith.constant 0 : i32
    %c0_i32_0 = arith.constant 0 : i32
    %c0_i32_1 = arith.constant 0 : i32
    return %c0_i32, %c0_i32_0 : i32, i32
  }
  func.func @transform_5(%arg0: i32) -> (i32, i32) {
    %c0_i32 = arith.constant 0 : i32
    %c0_i32_0 = arith.constant 0 : i32
    %c0_i32_1 = arith.constant 0 : i32
    return %c0_i32, %c0_i32_0 : i32, i32
  }
  func.func @transform_6(%arg0: i32) -> (i32, i32) {
    %c0_i32 = arith.constant 0 : i32
    %c0_i32_0 = arith.constant 0 : i32
    return %arg0, %c0_i32 : i32, i32
  }
  func.func @transform_7(%arg0: i32) -> (i32, i32) {
    %c0_i32 = arith.constant 0 : i32
    %c0_i32_0 = arith.constant 0 : i32
    return %arg0, %c0_i32 : i32, i32
  }
}

</mosaic_0001>

<llo_original>
// kernel: tpu_custom_call.1
$region0: #{tpu_custom_call.1}
  #allocation0 [shape = 'u32[]', space=smem, size = 0x4, offset = 0x4, fixed_abs, tag = 'smem constant byte address 0x4 - core index']
  #allocation1 [shape = 'u32[144,128]{1,0:T(1,128)}', space=vmem, size = 0x12000, scoped, tag = 'internal scratch']
  %s0 = inlined_call_operand.vmem [shape: bf16[128,128], index: 0, kind: input, shape index: {}]
  %s1 = inlined_call_operand.vmem [shape: bf16[128,16], index: 1, kind: input, shape index: {}]
  %s2 = inlined_call_operand.hbm [shape: f32[16,16], index: 2, kind: input, shape index: {}]
  %s3 = inlined_call_operand.vmem [shape: f32[1,16], index: 3, kind: input, shape index: {}]
  %s4 = inlined_call_operand.hbm [shape: f32[16,128], index: 4, kind: input, shape index: {}]
  %s5 = inlined_call_operand.vmem [shape: f32[16,128], index: 5, kind: input, shape index: {}]
  %s6 = inlined_call_operand.hbm [shape: bf16[128,128], index: 6, kind: output, shape index: {0}]
  %s7 = inlined_call_operand.hbm [shape: bf16[128,128], index: 7, kind: output, shape index: {1}]
  %8 = xla_tuple %s6, %s7
  %s9 = sld [smem:[#allocation0]]
  $region50: #{tpu_custom_call.1} parent=0
    _
  %s11 = ssub.s32 1, %s9
  %s12 = scalar_select 0, %s11, %s9
  $region1: #{tpu_custom_call.1} parent=0
    #allocation2 [shape = 'u8[8192]{0}', space=vmem, size = 0x2000, scoped, tag = 'input window, operand 2, single buffered']
    #allocation3 [shape = 's32[1]{0}', space=sflag, size = 0x4, scoped, tag = 'scoped memory for tpu_custom_call.1']
    #allocation4 [shape = 's32[1]{0}', space=sflag, size = 0x4, scoped, tag = 'scoped memory for tpu_custom_call.1']
    #allocation5 [shape = 'u8[8192]{0}', space=vmem, size = 0x2000, scoped, tag = 'input window, operand 4, single buffered']
    #allocation6 [shape = 's32[1]{0}', space=sflag, size = 0x4, scoped, tag = 'scoped memory for tpu_custom_call.1']
    #allocation7 [shape = 'u8[32768]{0}', space=vmem, size = 0x8000, scoped, tag = 'output window, operand 0, single buffered']
    #allocation8 [shape = 'u8[32768]{0}', space=vmem, size = 0x8000, scoped, tag = 'output window, operand 1, single buffered']
    #allocation9 [shape = 's32[1]{0}', space=sflag, size = 0x4, scoped, tag = 'scoped memory for tpu_custom_call.1']
    %13 = vsyncpa [#allocation3], 0
    %14 = vsyncpa [#allocation6], 0
    %15 = vsyncpa [#allocation4], 0
    %16 = vsyncpa [#allocation9], 0
    // Predicated region
    $region2: #{tpu_custom_call.1} parent=1 // pred_check
      _
    $region3: #{tpu_custom_call.1} parent=1 // pred_check_branch
      %18 = sbr.rel (0) target = $region5
    $region4: #{tpu_custom_call.1} parent=1 // pred_region
      _
    $region5: #{tpu_custom_call.1} parent=1 // pred_fallthru
      _
    // Predicated region
    $region6: #{tpu_custom_call.1} parent=1 // pred_check
      _
    $region7: #{tpu_custom_call.1} parent=1 // pred_check_branch
      %20 = sbr.rel (0) target = $region9
    $region8: #{tpu_custom_call.1} parent=1 // pred_region
      _
    $region9: #{tpu_custom_call.1} parent=1 // pred_fallthru
      _
    // Predicated region
    $region10: #{tpu_custom_call.1} parent=1 // pred_check
      _
    $region11: #{tpu_custom_call.1} parent=1 // pred_check_branch
      %22 = sbr.rel (0) target = $region13
    $region12: #{tpu_custom_call.1} parent=1 // pred_region
      %s24 = ssub.s32 256, 256
      %25 = vsyncadd [#allocation3], %s24
      %s26 = sshll.u32 [#allocation2], 4
      %s27 = int_to_ptr.vmem [resolvable:$true] %s26
      %32 = dma.hbm_to_vmem [thread:$0]  %s2, 256, %s27, [#allocation3], 128, 128, 8
    $region13: #{tpu_custom_call.1} parent=1 // pred_fallthru
      _
    // Predicated region
    $region14: #{tpu_custom_call.1} parent=1 // pred_check
      _
    $region15: #{tpu_custom_call.1} parent=1 // pred_check_branch
      %34 = sbr.rel (0) target = $region17
    $region16: #{tpu_custom_call.1} parent=1 // pred_region
      _
    $region17: #{tpu_custom_call.1} parent=1 // pred_fallthru
      _
    // Predicated region
    $region18: #{tpu_custom_call.1} parent=1 // pred_check
      _
    $region19: #{tpu_custom_call.1} parent=1 // pred_check_branch
      %36 = sbr.rel (0) target = $region21
    $region20: #{tpu_custom_call.1} parent=1 // pred_region
      %s38 = ssub.s32 256, 256
      %39 = vsyncadd [#allocation6], %s38
      %s40 = sshll.u32 [#allocation5], 4
      %s41 = int_to_ptr.vmem [resolvable:$true] %s40
      %46 = dma.hbm_to_vmem [thread:$0]  %s4, 256, %s41, [#allocation6], 128, 128, 8
    $region21: #{tpu_custom_call.1} parent=1 // pred_fallthru
      _
    // Predicated region
    $region22: #{tpu_custom_call.1} parent=1 // pred_check
      _
    $region23: #{tpu_custom_call.1} parent=1 // pred_check_branch
      %48 = sbr.rel (0) target = $region25
    $region24: #{tpu_custom_call.1} parent=1 // pred_region
      _
    $region25: #{tpu_custom_call.1} parent=1 // pred_fallthru
      _
    // Predicated region
    $region26: #{tpu_custom_call.1} parent=1 // pred_check
      _
    $region27: #{tpu_custom_call.1} parent=1 // pred_check_branch
      %50 = sbr.rel (0) target = $region29
    $region28: #{tpu_custom_call.1} parent=1 // pred_region
      %51 = dma.done [#allocation3], 256
    $region29: #{tpu_custom_call.1} parent=1 // pred_fallthru
      _
    // Predicated region
    $region30: #{tpu_custom_call.1} parent=1 // pred_check
      _
    $region31: #{tpu_custom_call.1} parent=1 // pred_check_branch
      %53 = sbr.rel (0) target = $region33
    $region32: #{tpu_custom_call.1} parent=1 // pred_region
      %54 = dma.done [#allocation6], 256
    $region33: #{tpu_custom_call.1} parent=1 // pred_fallthru
      _
    %v56 = vld [vmem:[%s0] sm:$0xf]
    %v57 = vld [vmem:[%s0 + $0x4] sm:$0xf]
    %v58 = vld [vmem:[%s0 + $0x8] sm:$0xf]
    %v59 = vld [vmem:[%s0 + $0xc] sm:$0xf]
    %v60 = vld [vmem:[%s0 + $0x10] sm:$0xf]
    %v61 = vld [vmem:[%s0 + $0x14] sm:$0xf]
    %v62 = vld [vmem:[%s0 + $0x18] sm:$0xf]
    %v63 = vld [vmem:[%s0 + $0x1c] sm:$0xf]
    %v64 = vld [vmem:[%s0 + $0x20] sm:$0xf]
    %v65 = vld [vmem:[%s0 + $0x24] sm:$0xf]
    %v66 = vld [vmem:[%s0 + $0x28] sm:$0xf]
    %v67 = vld [vmem:[%s0 + $0x2c] sm:$0xf]
    %v68 = vld [vmem:[%s0 + $0x30] sm:$0xf]
    %v69 = vld [vmem:[%s0 + $0x34] sm:$0xf]
    %v70 = vld [vmem:[%s0 + $0x38] sm:$0xf]
    %v71 = vld [vmem:[%s0 + $0x3c] sm:$0xf]
    %v72 = vld [vmem:[%s1] sm:$0xf]
    %v73 = vld [vmem:[%s1 + $0x4] sm:$0xf]
    %v74 = vld [vmem:[%s1 + $0x8] sm:$0xf]
    %v75 = vld [vmem:[%s1 + $0xc] sm:$0xf]
    %v76 = vld [vmem:[%s1 + $0x10] sm:$0xf]
    %v77 = vld [vmem:[%s1 + $0x14] sm:$0xf]
    %v78 = vld [vmem:[%s1 + $0x18] sm:$0xf]
    %v79 = vld [vmem:[%s1 + $0x1c] sm:$0xf]
    %v80 = vld [vmem:[%s1 + $0x20] sm:$0xf]
    %v81 = vld [vmem:[%s1 + $0x24] sm:$0xf]
    %v82 = vld [vmem:[%s1 + $0x28] sm:$0xf]
    %v83 = vld [vmem:[%s1 + $0x2c] sm:$0xf]
    %v84 = vld [vmem:[%s1 + $0x30] sm:$0xf]
    %v85 = vld [vmem:[%s1 + $0x34] sm:$0xf]
    %v86 = vld [vmem:[%s1 + $0x38] sm:$0xf]
    %v87 = vld [vmem:[%s1 + $0x3c] sm:$0xf]
    %v104 = vunpack.c.l.b16 %v56
    %v105 = vunpack.c.l.b16 %v57
    %v106 = vunpack.c.l.b16 %v58
    %v107 = vunpack.c.l.b16 %v59
    %v108 = vunpack.c.l.b16 %v60
    %v109 = vunpack.c.l.b16 %v61
    %v110 = vunpack.c.l.b16 %v62
    %v111 = vunpack.c.l.b16 %v63
    %v112 = vunpack.c.l.b16 %v64
    %v113 = vunpack.c.l.b16 %v65
    %v114 = vunpack.c.l.b16 %v66
    %v115 = vunpack.c.l.b16 %v67
    %v116 = vunpack.c.l.b16 %v68
    %v117 = vunpack.c.l.b16 %v69
    %v118 = vunpack.c.l.b16 %v70
    %v119 = vunpack.c.l.b16 %v71
    %v120 = vpack.c.b16 %v105, %v104
    %v121 = vpack.c.b16 %v107, %v106
    %v122 = vpack.c.b16 %v109, %v108
    %v123 = vpack.c.b16 %v111, %v110
    %v124 = vpack.c.b16 %v113, %v112
    %v125 = vpack.c.b16 %v115, %v114
    %v126 = vpack.c.b16 %v117, %v116
    %v127 = vpack.c.b16 %v119, %v118
    %v152 = vunpack.c.l.b16 %v72
    %v153 = vunpack.c.l.b16 %v73
    %v154 = vunpack.c.l.b16 %v74
    %v155 = vunpack.c.l.b16 %v75
    %v156 = vunpack.c.l.b16 %v76
    %v157 = vunpack.c.l.b16 %v77
    %v158 = vunpack.c.l.b16 %v78
    %v159 = vunpack.c.l.b16 %v79
    %v160 = vunpack.c.l.b16 %v80
    %v161 = vunpack.c.l.b16 %v81
    %v162 = vunpack.c.l.b16 %v82
    %v163 = vunpack.c.l.b16 %v83
    %v164 = vunpack.c.l.b16 %v84
    %v165 = vunpack.c.l.b16 %v85
    %v166 = vunpack.c.l.b16 %v86
    %v167 = vunpack.c.l.b16 %v87
    %v168 = vpack.c.b16 %v153, %v152
    %v169 = vpack.c.b16 %v155, %v154
    %v170 = vpack.c.b16 %v157, %v156
    %v171 = vpack.c.b16 %v159, %v158
    %v172 = vpack.c.b16 %v161, %v160
    %v173 = vpack.c.b16 %v163, %v162
    %v174 = vpack.c.b16 %v165, %v164
    %v175 = vpack.c.b16 %v167, %v166
    %184 = vmatprep.subr.bf16.mxu0 0
    %185 = vmatpush1.bf16.msra.mxu0 %v175
    %186 = vmatprep.subr.bf16.mxu0 0
    %187 = vmatpush1.bf16.msra.mxu0 %v174
    %188 = vmatprep.subr.bf16.mxu0 0
    %189 = vmatpush1.bf16.msra.mxu0 %v173
    %190 = vmatprep.subr.bf16.mxu0 0
    %191 = vmatpush1.bf16.msra.mxu0 %v172
    %192 = vmatprep.subr.bf16.mxu0 0
    %193 = vmatpush1.bf16.msra.mxu0 %v171
    %194 = vmatprep.subr.bf16.mxu0 0
    %195 = vmatpush1.bf16.msra.mxu0 %v170
    %196 = vmatprep.subr.bf16.mxu0 0
    %197 = vmatpush1.bf16.msra.mxu0 %v169
    %198 = vmatprep.subr.bf16.mxu0 0
    %199 = vmatpush1.bf16.msra.mxu0 %v168
    %200 = vmatprep.subr.bf16.mxu0 0
    %201 = vmatpush2.bf16.msra.mxu0 0
    %202 = vmatprep.subr.bf16.mxu0 0
    %203 = vmatpush2.bf16.msra.mxu0 0
    %204 = vmatprep.subr.bf16.mxu0 0
    %205 = vmatpush2.bf16.msra.mxu0 0
    %206 = vmatprep.subr.bf16.mxu0 0
    %207 = vmatpush2.bf16.msra.mxu0 0
    %208 = vmatprep.subr.bf16.mxu0 0
    %209 = vmatpush2.bf16.msra.mxu0 0
    %210 = vmatprep.subr.bf16.mxu0 0
    %211 = vmatpush2.bf16.msra.mxu0 0
    %212 = vmatprep.subr.bf16.mxu0 0
    %213 = vmatpush2.bf16.msra.mxu0 0
    %214 = vmatprep.subr.bf16.mxu0 0
    %215 = vmatpush2.bf16.msra.mxu0 0
    %216 = vmatprep.mubr.bf16.mxu0 0
    %217 = vmatmul.mubr.bf16.gmra.mxu0 %v120
    %v218 = vpop.f32.mrf.mxu0
    %v219 = vadd.f32 0.0, %v218
    %v220 = vpop.f32.mrf.mxu0
    %v221 = vpop.f32.mrf.mxu0
    %v222 = vadd.f32 0.0, %v221
    %v223 = vpop.f32.mrf.mxu0
    %224 = vmatprep.mubr.bf16.mxu0 0
    %225 = vmatmul.mubr.bf16.gmra.mxu0 %v121
    %v226 = vpop.f32.mrf.mxu0
    %v227 = vadd.f32 0.0, %v226
    %v228 = vpop.f32.mrf.mxu0
    %v229 = vpop.f32.mrf.mxu0
    %v230 = vadd.f32 0.0, %v229
    %v231 = vpop.f32.mrf.mxu0
    %232 = vmatprep.mubr.bf16.mxu0 0
    %233 = vmatmul.mubr.bf16.gmra.mxu0 %v122
    %v234 = vpop.f32.mrf.mxu0
    %v235 = vadd.f32 0.0, %v234
    %v236 = vpop.f32.mrf.mxu0
    %v237 = vpop.f32.mrf.mxu0
    %v238 = vadd.f32 0.0, %v237
    %v239 = vpop.f32.mrf.mxu0
    %240 = vmatprep.mubr.bf16.mxu0 0
    %241 = vmatmul.mubr.bf16.gmra.mxu0 %v123
    %v242 = vpop.f32.mrf.mxu0
    %v243 = vadd.f32 0.0, %v242
    %v244 = vpop.f32.mrf.mxu0
    %v245 = vpop.f32.mrf.mxu0
    %v246 = vadd.f32 0.0, %v245
    %v247 = vpop.f32.mrf.mxu0
    %248 = vmatprep.mubr.bf16.mxu0 0
    %249 = vmatmul.mubr.bf16.gmra.mxu0 %v124
    %v250 = vpop.f32.mrf.mxu0
    %v251 = vadd.f32 0.0, %v250
    %v252 = vpop.f32.mrf.mxu0
    %v253 = vpop.f32.mrf.mxu0
    %v254 = vadd.f32 0.0, %v253
    %v255 = vpop.f32.mrf.mxu0
    %256 = vmatprep.mubr.bf16.mxu0 0
    %257 = vmatmul.mubr.bf16.gmra.mxu0 %v125
    %v258 = vpop.f32.mrf.mxu0
    %v259 = vadd.f32 0.0, %v258
    %v260 = vpop.f32.mrf.mxu0
    %v261 = vpop.f32.mrf.mxu0
    %v262 = vadd.f32 0.0, %v261
    %v263 = vpop.f32.mrf.mxu0
    %264 = vmatprep.mubr.bf16.mxu0 0
    %265 = vmatmul.mubr.bf16.gmra.mxu0 %v126
    %v266 = vpop.f32.mrf.mxu0
    %v267 = vadd.f32 0.0, %v266
    %v268 = vpop.f32.mrf.mxu0
    %v269 = vpop.f32.mrf.mxu0
    %v270 = vadd.f32 0.0, %v269
    %v271 = vpop.f32.mrf.mxu0
    %272 = vmatprep.mubr.bf16.mxu0 0
    %273 = vmatmul.mubr.bf16.gmra.mxu0 %v127
    %v274 = vpop.f32.mrf.mxu0
    %v275 = vadd.f32 0.0, %v274
    %v276 = vpop.f32.mrf.mxu0
    %v277 = vpop.f32.mrf.mxu0
    %v278 = vadd.f32 0.0, %v277
    %v279 = vpop.f32.mrf.mxu0
    %280 = vdwg.mxu0
    %v281 = vld [vmem:[#allocation2] sm:$0xff]
    %v282 = vld [vmem:[#allocation2 + $0x8] sm:$0xff]
    %v283 = vld [vmem:[%s3] sm:$0x1]
    %v285 = vlaneseq
    %v286 = vshrl.u32 %v285, 7
    %v287 = vsub.s32 0, %v286
    %v288 = vrot.slane %v283, %v287
    %vm290 = vcmask 130048
    %v292 = vsel %vm290, %v219, 0
    %v295 = vsel %vm290, %v222, 0
    %v298 = vsel %vm290, %v227, 0
    %v301 = vsel %vm290, %v230, 0
    %v304 = vsel %vm290, %v235, 0
    %v307 = vsel %vm290, %v238, 0
    %v310 = vsel %vm290, %v243, 0
    %v313 = vsel %vm290, %v246, 0
    %v316 = vsel %vm290, %v251, 0
    %v319 = vsel %vm290, %v254, 0
    %v322 = vsel %vm290, %v259, 0
    %v325 = vsel %vm290, %v262, 0
    %v328 = vsel %vm290, %v267, 0
    %v331 = vsel %vm290, %v270, 0
    %v334 = vsel %vm290, %v275, 0
    %v337 = vsel %vm290, %v278, 0
    %339 = vmatprep.subr.mxu0 0.0
    %340 = vmatpush1.msra.mxu0 0.0
    %341 = vmatprep.subr.mxu0 0.0
    %342 = vmatpush1.msra.mxu0 0.0
    %343 = vmatprep.subr.mxu0 0.0
    %344 = vmatpush1.msra.mxu0 0.0
    %345 = vmatprep.subr.mxu0 0.0
    %346 = vmatpush1.msra.mxu0 0.0
    %347 = vmatprep.subr.mxu0 0.0
    %348 = vmatpush1.msra.mxu0 0.0
    %349 = vmatprep.subr.mxu0 0.0
    %350 = vmatpush1.msra.mxu0 0.0
    %351 = vmatprep.subr.mxu0 0.0
    %352 = vmatpush1.msra.mxu0 0.0
    %353 = vmatprep.subr.mxu0 0.0
    %354 = vmatpush1.msra.mxu0 0.0
    %355 = vmatprep.subr.mxu0 0.0
    %356 = vmatpush1.msra.mxu0 0.0
    %357 = vmatprep.subr.mxu0 0.0
    %358 = vmatpush1.msra.mxu0 0.0
    %359 = vmatprep.subr.mxu0 0.0
    %360 = vmatpush1.msra.mxu0 0.0
    %361 = vmatprep.subr.mxu0 0.0
    %362 = vmatpush1.msra.mxu0 0.0
    %363 = vmatprep.subr.mxu0 0.0
    %364 = vmatpush1.msra.mxu0 0.0
    %365 = vmatprep.subr.mxu0 0.0
    %366 = vmatpush1.msra.mxu0 0.0
    %367 = vmatprep.subr.mxu0 0.0
    %368 = vmatpush1.msra.mxu0 %v282
    %369 = vmatprep.subr.mxu0 0.0
    %370 = vmatpush1.msra.mxu0 %v281
    %371 = vmatprep.subr.mxu0 0.0
    %372 = vmatpush2.msra.mxu0 0.0
    %373 = vmatprep.subr.mxu0 0.0
    %374 = vmatpush2.msra.mxu0 0.0
    %375 = vmatprep.subr.mxu0 0.0
    %376 = vmatpush2.msra.mxu0 0.0
    %377 = vmatprep.subr.mxu0 0.0
    %378 = vmatpush2.msra.mxu0 0.0
    %379 = vmatprep.subr.mxu0 0.0
    %380 = vmatpush2.msra.mxu0 0.0
    %381 = vmatprep.subr.mxu0 0.0
    %382 = vmatpush2.msra.mxu0 0.0
    %383 = vmatprep.subr.mxu0 0.0
    %384 = vmatpush2.msra.mxu0 0.0
    %385 = vmatprep.subr.mxu0 0.0
    %386 = vmatpush2.msra.mxu0 0.0
    %387 = vmatprep.subr.mxu0 0.0
    %388 = vmatpush2.msra.mxu0 0.0
    %389 = vmatprep.subr.mxu0 0.0
    %390 = vmatpush2.msra.mxu0 0.0
    %391 = vmatprep.subr.mxu0 0.0
    %392 = vmatpush2.msra.mxu0 0.0
    %393 = vmatprep.subr.mxu0 0.0
    %394 = vmatpush2.msra.mxu0 0.0
    %395 = vmatprep.subr.mxu0 0.0
    %396 = vmatpush2.msra.mxu0 0.0
    %397 = vmatprep.subr.mxu0 0.0
    %398 = vmatpush2.msra.mxu0 0.0
    %399 = vmatprep.subr.mxu0 0.0
    %400 = vmatpush2.msra.mxu0 0.0
    %401 = vmatprep.subr.mxu0 0.0
    %402 = vmatpush2.msra.mxu0 0.0
    %403 = vmatprep.mubr.f32.mxu0 0.0
    %404 = vmatmul.mubr.f32.gmra.mxu0 %v292
    %v405 = vpop.f32.mrf.mxu0
    %v406 = vadd.f32 %v288, %v405
    %v407 = vpop.f32.mrf.mxu0
    %408 = vmatprep.mubr.f32.mxu0 0.0
    %409 = vmatmul.mubr.f32.gmra.mxu0 %v295
    %v410 = vpop.f32.mrf.mxu0
    %v411 = vadd.f32 %v288, %v410
    %v412 = vpop.f32.mrf.mxu0
    %413 = vmatprep.mubr.f32.mxu0 0.0
    %414 = vmatmul.mubr.f32.gmra.mxu0 %v298
    %v415 = vpop.f32.mrf.mxu0
    %v416 = vadd.f32 %v288, %v415
    %v417 = vpop.f32.mrf.mxu0
    %418 = vmatprep.mubr.f32.mxu0 0.0
    %419 = vmatmul.mubr.f32.gmra.mxu0 %v301
    %v420 = vpop.f32.mrf.mxu0
    %v421 = vadd.f32 %v288, %v420
    %v422 = vpop.f32.mrf.mxu0
    %423 = vmatprep.mubr.f32.mxu0 0.0
    %424 = vmatmul.mubr.f32.gmra.mxu0 %v304
    %v425 = vpop.f32.mrf.mxu0
    %v426 = vadd.f32 %v288, %v425
    %v427 = vpop.f32.mrf.mxu0
    %428 = vmatprep.mubr.f32.mxu0 0.0
    %429 = vmatmul.mubr.f32.gmra.mxu0 %v307
    %v430 = vpop.f32.mrf.mxu0
    %v431 = vadd.f32 %v288, %v430
    %v432 = vpop.f32.mrf.mxu0
    %433 = vmatprep.mubr.f32.mxu0 0.0
    %434 = vmatmul.mubr.f32.gmra.mxu0 %v310
    %v435 = vpop.f32.mrf.mxu0
    %v436 = vadd.f32 %v288, %v435
    %v437 = vpop.f32.mrf.mxu0
    %438 = vmatprep.mubr.f32.mxu0 0.0
    %439 = vmatmul.mubr.f32.gmra.mxu0 %v313
    %v440 = vpop.f32.mrf.mxu0
    %v441 = vadd.f32 %v288, %v440
    %v442 = vpop.f32.mrf.mxu0
    %443 = vmatprep.mubr.f32.mxu0 0.0
    %444 = vmatmul.mubr.f32.gmra.mxu0 %v316
    %v445 = vpop.f32.mrf.mxu0
    %v446 = vadd.f32 %v288, %v445
    %v447 = vpop.f32.mrf.mxu0
    %448 = vmatprep.mubr.f32.mxu0 0.0
    %449 = vmatmul.mubr.f32.gmra.mxu0 %v319
    %v450 = vpop.f32.mrf.mxu0
    %v451 = vadd.f32 %v288, %v450
    %v452 = vpop.f32.mrf.mxu0
    %453 = vmatprep.mubr.f32.mxu0 0.0
    %454 = vmatmul.mubr.f32.gmra.mxu0 %v322
    %v455 = vpop.f32.mrf.mxu0
    %v456 = vadd.f32 %v288, %v455
    %v457 = vpop.f32.mrf.mxu0
    %458 = vmatprep.mubr.f32.mxu0 0.0
    %459 = vmatmul.mubr.f32.gmra.mxu0 %v325
    %v460 = vpop.f32.mrf.mxu0
    %v461 = vadd.f32 %v288, %v460
    %v462 = vpop.f32.mrf.mxu0
    %463 = vmatprep.mubr.f32.mxu0 0.0
    %464 = vmatmul.mubr.f32.gmra.mxu0 %v328
    %v465 = vpop.f32.mrf.mxu0
    %v466 = vadd.f32 %v288, %v465
    %v467 = vpop.f32.mrf.mxu0
    %468 = vmatprep.mubr.f32.mxu0 0.0
    %469 = vmatmul.mubr.f32.gmra.mxu0 %v331
    %v470 = vpop.f32.mrf.mxu0
    %v471 = vadd.f32 %v288, %v470
    %v472 = vpop.f32.mrf.mxu0
    %473 = vmatprep.mubr.f32.mxu0 0.0
    %474 = vmatmul.mubr.f32.gmra.mxu0 %v334
    %v475 = vpop.f32.mrf.mxu0
    %v476 = vadd.f32 %v288, %v475
    %v477 = vpop.f32.mrf.mxu0
    %478 = vmatprep.mubr.f32.mxu0 0.0
    %479 = vmatmul.mubr.f32.gmra.mxu0 %v337
    %v480 = vpop.f32.mrf.mxu0
    %v481 = vadd.f32 %v288, %v480
    %v482 = vpop.f32.mrf.mxu0
    %483 = vdwg.mxu0
    %v484 = vld [vmem:[#allocation5] sm:$0xff]
    %v485 = vld [vmem:[#allocation5 + $0x8] sm:$0xff]
    %v487 = vsel %vm290, %v406, 0
    %v490 = vsel %vm290, %v411, 0
    %v493 = vsel %vm290, %v416, 0
    %v496 = vsel %vm290, %v421, 0
    %v499 = vsel %vm290, %v426, 0
    %v502 = vsel %vm290, %v431, 0
    %v505 = vsel %vm290, %v436, 0
    %v508 = vsel %vm290, %v441, 0
    %v511 = vsel %vm290, %v446, 0
    %v514 = vsel %vm290, %v451, 0
    %v517 = vsel %vm290, %v456, 0
    %v520 = vsel %vm290, %v461, 0
    %v523 = vsel %vm290, %v466, 0
    %v526 = vsel %vm290, %v471, 0
    %v529 = vsel %vm290, %v476, 0
    %v532 = vsel %vm290, %v481, 0
    %534 = vmatprep.subr.mxu0 0.0
    %535 = vmatpush1.msra.mxu0 0.0
    %536 = vmatprep.subr.mxu0 0.0
    %537 = vmatpush1.msra.mxu0 0.0
    %538 = vmatprep.subr.mxu0 0.0
    %539 = vmatpush1.msra.mxu0 0.0
    %540 = vmatprep.subr.mxu0 0.0
    %541 = vmatpush1.msra.mxu0 0.0
    %542 = vmatprep.subr.mxu0 0.0
    %543 = vmatpush1.msra.mxu0 0.0
    %544 = vmatprep.subr.mxu0 0.0
    %545 = vmatpush1.msra.mxu0 0.0
    %546 = vmatprep.subr.mxu0 0.0
    %547 = vmatpush1.msra.mxu0 0.0
    %548 = vmatprep.subr.mxu0 0.0
    %549 = vmatpush1.msra.mxu0 0.0
    %550 = vmatprep.subr.mxu0 0.0
    %551 = vmatpush1.msra.mxu0 0.0
    %552 = vmatprep.subr.mxu0 0.0
    %553 = vmatpush1.msra.mxu0 0.0
    %554 = vmatprep.subr.mxu0 0.0
    %555 = vmatpush1.msra.mxu0 0.0
    %556 = vmatprep.subr.mxu0 0.0
    %557 = vmatpush1.msra.mxu0 0.0
    %558 = vmatprep.subr.mxu0 0.0
    %559 = vmatpush1.msra.mxu0 0.0
    %560 = vmatprep.subr.mxu0 0.0
    %561 = vmatpush1.msra.mxu0 0.0
    %562 = vmatprep.subr.mxu0 0.0
    %563 = vmatpush1.msra.mxu0 %v485
    %564 = vmatprep.subr.mxu0 0.0
    %565 = vmatpush1.msra.mxu0 %v484
    %566 = vmatprep.subr.mxu0 0.0
    %567 = vmatpush2.msra.mxu0 0.0
    %568 = vmatprep.subr.mxu0 0.0
    %569 = vmatpush2.msra.mxu0 0.0
    %570 = vmatprep.subr.mxu0 0.0
    %571 = vmatpush2.msra.mxu0 0.0
    %572 = vmatprep.subr.mxu0 0.0
    %573 = vmatpush2.msra.mxu0 0.0
    %574 = vmatprep.subr.mxu0 0.0
    %575 = vmatpush2.msra.mxu0 0.0
    %576 = vmatprep.subr.mxu0 0.0
    %577 = vmatpush2.msra.mxu0 0.0
    %578 = vmatprep.subr.mxu0 0.0
    %579 = vmatpush2.msra.mxu0 0.0
    %580 = vmatprep.subr.mxu0 0.0
    %581 = vmatpush2.msra.mxu0 0.0
    %582 = vmatprep.subr.mxu0 0.0
    %583 = vmatpush2.msra.mxu0 0.0
    %584 = vmatprep.subr.mxu0 0.0
    %585 = vmatpush2.msra.mxu0 0.0
    %586 = vmatprep.subr.mxu0 0.0
    %587 = vmatpush2.msra.mxu0 0.0
    %588 = vmatprep.subr.mxu0 0.0
    %589 = vmatpush2.msra.mxu0 0.0
    %590 = vmatprep.subr.mxu0 0.0
    %591 = vmatpush2.msra.mxu0 0.0
    %592 = vmatprep.subr.mxu0 0.0
    %593 = vmatpush2.msra.mxu0 0.0
    %594 = vmatprep.subr.mxu0 0.0
    %595 = vmatpush2.msra.mxu0 0.0
    %596 = vmatprep.subr.mxu0 0.0
    %597 = vmatpush2.msra.mxu0 0.0
    %598 = vmatprep.mubr.f32.mxu0 0.0
    %599 = vmatmul.mubr.f32.gmra.mxu0 %v487
    %v600 = vpop.f32.mrf.mxu0
    %v601 = vadd.f32 0.0, %v600
    %v602 = vpop.f32.mrf.mxu0
    %603 = vmatprep.mubr.f32.mxu0 0.0
    %604 = vmatmul.mubr.f32.gmra.mxu0 %v490
    %v605 = vpop.f32.mrf.mxu0
    %v606 = vadd.f32 0.0, %v605
    %v607 = vpop.f32.mrf.mxu0
    %608 = vmatprep.mubr.f32.mxu0 0.0
    %609 = vmatmul.mubr.f32.gmra.mxu0 %v493
    %v610 = vpop.f32.mrf.mxu0
    %v611 = vadd.f32 0.0, %v610
    %v612 = vpop.f32.mrf.mxu0
    %613 = vmatprep.mubr.f32.mxu0 0.0
    %614 = vmatmul.mubr.f32.gmra.mxu0 %v496
    %v615 = vpop.f32.mrf.mxu0
    %v616 = vadd.f32 0.0, %v615
    %v617 = vpop.f32.mrf.mxu0
    %618 = vmatprep.mubr.f32.mxu0 0.0
    %619 = vmatmul.mubr.f32.gmra.mxu0 %v499
    %v620 = vpop.f32.mrf.mxu0
    %v621 = vadd.f32 0.0, %v620
    %v622 = vpop.f32.mrf.mxu0
    %623 = vmatprep.mubr.f32.mxu0 0.0
    %624 = vmatmul.mubr.f32.gmra.mxu0 %v502
    %v625 = vpop.f32.mrf.mxu0
    %v626 = vadd.f32 0.0, %v625
    %v627 = vpop.f32.mrf.mxu0
    %628 = vmatprep.mubr.f32.mxu0 0.0
    %629 = vmatmul.mubr.f32.gmra.mxu0 %v505
    %v630 = vpop.f32.mrf.mxu0
    %v631 = vadd.f32 0.0, %v630
    %v632 = vpop.f32.mrf.mxu0
    %633 = vmatprep.mubr.f32.mxu0 0.0
    %634 = vmatmul.mubr.f32.gmra.mxu0 %v508
    %v635 = vpop.f32.mrf.mxu0
    %v636 = vadd.f32 0.0, %v635
    %v637 = vpop.f32.mrf.mxu0
    %638 = vmatprep.mubr.f32.mxu0 0.0
    %639 = vmatmul.mubr.f32.gmra.mxu0 %v511
    %v640 = vpop.f32.mrf.mxu0
    %v641 = vadd.f32 0.0, %v640
    %v642 = vpop.f32.mrf.mxu0
    %643 = vmatprep.mubr.f32.mxu0 0.0
    %644 = vmatmul.mubr.f32.gmra.mxu0 %v514
    %v645 = vpop.f32.mrf.mxu0
    %v646 = vadd.f32 0.0, %v645
    %v647 = vpop.f32.mrf.mxu0
    %648 = vmatprep.mubr.f32.mxu0 0.0
    %649 = vmatmul.mubr.f32.gmra.mxu0 %v517
    %v650 = vpop.f32.mrf.mxu0
    %v651 = vadd.f32 0.0, %v650
    %v652 = vpop.f32.mrf.mxu0
    %653 = vmatprep.mubr.f32.mxu0 0.0
    %654 = vmatmul.mubr.f32.gmra.mxu0 %v520
    %v655 = vpop.f32.mrf.mxu0
    %v656 = vadd.f32 0.0, %v655
    %v657 = vpop.f32.mrf.mxu0
    %658 = vmatprep.mubr.f32.mxu0 0.0
    %659 = vmatmul.mubr.f32.gmra.mxu0 %v523
    %v660 = vpop.f32.mrf.mxu0
    %v661 = vadd.f32 0.0, %v660
    %v662 = vpop.f32.mrf.mxu0
    %663 = vmatprep.mubr.f32.mxu0 0.0
    %664 = vmatmul.mubr.f32.gmra.mxu0 %v526
    %v665 = vpop.f32.mrf.mxu0
    %v666 = vadd.f32 0.0, %v665
    %v667 = vpop.f32.mrf.mxu0
    %668 = vmatprep.mubr.f32.mxu0 0.0
    %669 = vmatmul.mubr.f32.gmra.mxu0 %v529
    %v670 = vpop.f32.mrf.mxu0
    %v671 = vadd.f32 0.0, %v670
    %v672 = vpop.f32.mrf.mxu0
    %673 = vmatprep.mubr.f32.mxu0 0.0
    %674 = vmatmul.mubr.f32.gmra.mxu0 %v532
    %v675 = vpop.f32.mrf.mxu0
    %v676 = vadd.f32 0.0, %v675
    %v677 = vpop.f32.mrf.mxu0
    %678 = vdwg.mxu0
    %v679 = vpack.c.bf16 %v606, %v601
    %v680 = vpack.c.bf16 %v616, %v611
    %v681 = vpack.c.bf16 %v626, %v621
    %v682 = vpack.c.bf16 %v636, %v631
    %v683 = vpack.c.bf16 %v646, %v641
    %v684 = vpack.c.bf16 %v656, %v651
    %v685 = vpack.c.bf16 %v666, %v661
    %v686 = vpack.c.bf16 %v676, %v671
    %v695 = vunpack.c.l.b16 %v679
    %v696 = vunpack.c.h.b16 %v679
    %v697 = vunpack.c.l.b16 %v680
    %v698 = vunpack.c.h.b16 %v680
    %v699 = vunpack.c.l.b16 %v681
    %v700 = vunpack.c.h.b16 %v681
    %v701 = vunpack.c.l.b16 %v682
    %v702 = vunpack.c.h.b16 %v682
    %v703 = vunpack.c.l.b16 %v683
    %v704 = vunpack.c.h.b16 %v683
    %v705 = vunpack.c.l.b16 %v684
    %v706 = vunpack.c.h.b16 %v684
    %v707 = vunpack.c.l.b16 %v685
    %v708 = vunpack.c.h.b16 %v685
    %v709 = vunpack.c.l.b16 %v686
    %v710 = vunpack.c.h.b16 %v686
    %v711 = vpack.c.b16 %v695, %v695
    %v712 = vpack.c.b16 %v696, %v696
    %v713 = vpack.c.b16 %v697, %v697
    %v714 = vpack.c.b16 %v698, %v698
    %v715 = vpack.c.b16 %v699, %v699
    %v716 = vpack.c.b16 %v700, %v700
    %v717 = vpack.c.b16 %v701, %v701
    %v718 = vpack.c.b16 %v702, %v702
    %v719 = vpack.c.b16 %v703, %v703
    %v720 = vpack.c.b16 %v704, %v704
    %v721 = vpack.c.b16 %v705, %v705
    %v722 = vpack.c.b16 %v706, %v706
    %v723 = vpack.c.b16 %v707, %v707
    %v724 = vpack.c.b16 %v708, %v708
    %v725 = vpack.c.b16 %v709, %v709
    %v726 = vpack.c.b16 %v710, %v710
    %743 = vst [vmem:[#allocation7] sm:$0xf] %v711
    %744 = vst [vmem:[#allocation7 + $0x4] sm:$0xf] %v712
    %745 = vst [vmem:[#allocation7 + $0x8] sm:$0xf] %v713
    %746 = vst [vmem:[#allocation7 + $0xc] sm:$0xf] %v714
    %747 = vst [vmem:[#allocation7 + $0x10] sm:$0xf] %v715
    %748 = vst [vmem:[#allocation7 + $0x14] sm:$0xf] %v716
    %749 = vst [vmem:[#allocation7 + $0x18] sm:$0xf] %v717
    %750 = vst [vmem:[#allocation7 + $0x1c] sm:$0xf] %v718
    %751 = vst [vmem:[#allocation7 + $0x20] sm:$0xf] %v719
    %752 = vst [vmem:[#allocation7 + $0x24] sm:$0xf] %v720
    %753 = vst [vmem:[#allocation7 + $0x28] sm:$0xf] %v721
    %754 = vst [vmem:[#allocation7 + $0x2c] sm:$0xf] %v722
    %755 = vst [vmem:[#allocation7 + $0x30] sm:$0xf] %v723
    %756 = vst [vmem:[#allocation7 + $0x34] sm:$0xf] %v724
    %757 = vst [vmem:[#allocation7 + $0x38] sm:$0xf] %v725
    %758 = vst [vmem:[#allocation7 + $0x3c] sm:$0xf] %v726
    %v759 = vld [vmem:[%s5] sm:$0xff]
    %v760 = vld [vmem:[%s5 + $0x8] sm:$0xff]
    %761 = vmatprep.subr.mxu0 0.0
    %762 = vmatpush1.msra.mxu0 0.0
    %763 = vmatprep.subr.mxu0 0.0
    %764 = vmatpush1.msra.mxu0 0.0
    %765 = vmatprep.subr.mxu0 0.0
    %766 = vmatpush1.msra.mxu0 0.0
    %767 = vmatprep.subr.mxu0 0.0
    %768 = vmatpush1.msra.mxu0 0.0
    %769 = vmatprep.subr.mxu0 0.0
    %770 = vmatpush1.msra.mxu0 0.0
    %771 = vmatprep.subr.mxu0 0.0
    %772 = vmatpush1.msra.mxu0 0.0
    %773 = vmatprep.subr.mxu0 0.0
    %774 = vmatpush1.msra.mxu0 0.0
    %775 = vmatprep.subr.mxu0 0.0
    %776 = vmatpush1.msra.mxu0 0.0
    %777 = vmatprep.subr.mxu0 0.0
    %778 = vmatpush1.msra.mxu0 0.0
    %779 = vmatprep.subr.mxu0 0.0
    %780 = vmatpush1.msra.mxu0 0.0
    %781 = vmatprep.subr.mxu0 0.0
    %782 = vmatpush1.msra.mxu0 0.0
    %783 = vmatprep.subr.mxu0 0.0
    %784 = vmatpush1.msra.mxu0 0.0
    %785 = vmatprep.subr.mxu0 0.0
    %786 = vmatpush1.msra.mxu0 0.0
    %787 = vmatprep.subr.mxu0 0.0
    %788 = vmatpush1.msra.mxu0 0.0
    %789 = vmatprep.subr.mxu0 0.0
    %790 = vmatpush1.msra.mxu0 %v760
    %791 = vmatprep.subr.mxu0 0.0
    %792 = vmatpush1.msra.mxu0 %v759
    %793 = vmatprep.subr.mxu0 0.0
    %794 = vmatpush2.msra.mxu0 0.0
    %795 = vmatprep.subr.mxu0 0.0
    %796 = vmatpush2.msra.mxu0 0.0
    %797 = vmatprep.subr.mxu0 0.0
    %798 = vmatpush2.msra.mxu0 0.0
    %799 = vmatprep.subr.mxu0 0.0
    %800 = vmatpush2.msra.mxu0 0.0
    %801 = vmatprep.subr.mxu0 0.0
    %802 = vmatpush2.msra.mxu0 0.0
    %803 = vmatprep.subr.mxu0 0.0
    %804 = vmatpush2.msra.mxu0 0.0
    %805 = vmatprep.subr.mxu0 0.0
    %806 = vmatpush2.msra.mxu0 0.0
    %807 = vmatprep.subr.mxu0 0.0
    %808 = vmatpush2.msra.mxu0 0.0
    %809 = vmatprep.subr.mxu0 0.0
    %810 = vmatpush2.msra.mxu0 0.0
    %811 = vmatprep.subr.mxu0 0.0
    %812 = vmatpush2.msra.mxu0 0.0
    %813 = vmatprep.subr.mxu0 0.0
    %814 = vmatpush2.msra.mxu0 0.0
    %815 = vmatprep.subr.mxu0 0.0
    %816 = vmatpush2.msra.mxu0 0.0
    %817 = vmatprep.subr.mxu0 0.0
    %818 = vmatpush2.msra.mxu0 0.0
    %819 = vmatprep.subr.mxu0 0.0
    %820 = vmatpush2.msra.mxu0 0.0
    %821 = vmatprep.subr.mxu0 0.0
    %822 = vmatpush2.msra.mxu0 0.0
    %823 = vmatprep.subr.mxu0 0.0
    %824 = vmatpush2.msra.mxu0 0.0
    %825 = vmatprep.mubr.f32.mxu0 0.0
    %826 = vmatmul.mubr.f32.gmra.mxu0 %v487
    %v827 = vpop.f32.mrf.mxu0
    %v828 = vadd.f32 0.0, %v827
    %v829 = vpop.f32.mrf.mxu0
    %830 = vmatprep.mubr.f32.mxu0 0.0
    %831 = vmatmul.mubr.f32.gmra.mxu0 %v490
    %v832 = vpop.f32.mrf.mxu0
    %v833 = vadd.f32 0.0, %v832
    %v834 = vpop.f32.mrf.mxu0
    %835 = vmatprep.mubr.f32.mxu0 0.0
    %836 = vmatmul.mubr.f32.gmra.mxu0 %v493
    %v837 = vpop.f32.mrf.mxu0
    %v838 = vadd.f32 0.0, %v837
    %v839 = vpop.f32.mrf.mxu0
    %840 = vmatprep.mubr.f32.mxu0 0.0
    %841 = vmatmul.mubr.f32.gmra.mxu0 %v496
    %v842 = vpop.f32.mrf.mxu0
    %v843 = vadd.f32 0.0, %v842
    %v844 = vpop.f32.mrf.mxu0
    %845 = vmatprep.mubr.f32.mxu0 0.0
    %846 = vmatmul.mubr.f32.gmra.mxu0 %v499
    %v847 = vpop.f32.mrf.mxu0
    %v848 = vadd.f32 0.0, %v847
    %v849 = vpop.f32.mrf.mxu0
    %850 = vmatprep.mubr.f32.mxu0 0.0
    %851 = vmatmul.mubr.f32.gmra.mxu0 %v502
    %v852 = vpop.f32.mrf.mxu0
    %v853 = vadd.f32 0.0, %v852
    %v854 = vpop.f32.mrf.mxu0
    %855 = vmatprep.mubr.f32.mxu0 0.0
    %856 = vmatmul.mubr.f32.gmra.mxu0 %v505
    %v857 = vpop.f32.mrf.mxu0
    %v858 = vadd.f32 0.0, %v857
    %v859 = vpop.f32.mrf.mxu0
    %860 = vmatprep.mubr.f32.mxu0 0.0
    %861 = vmatmul.mubr.f32.gmra.mxu0 %v508
    %v862 = vpop.f32.mrf.mxu0
    %v863 = vadd.f32 0.0, %v862
    %v864 = vpop.f32.mrf.mxu0
    %865 = vmatprep.mubr.f32.mxu0 0.0
    %866 = vmatmul.mubr.f32.gmra.mxu0 %v511
    %v867 = vpop.f32.mrf.mxu0
    %v868 = vadd.f32 0.0, %v867
    %v869 = vpop.f32.mrf.mxu0
    %870 = vmatprep.mubr.f32.mxu0 0.0
    %871 = vmatmul.mubr.f32.gmra.mxu0 %v514
    %v872 = vpop.f32.mrf.mxu0
    %v873 = vadd.f32 0.0, %v872
    %v874 = vpop.f32.mrf.mxu0
    %875 = vmatprep.mubr.f32.mxu0 0.0
    %876 = vmatmul.mubr.f32.gmra.mxu0 %v517
    %v877 = vpop.f32.mrf.mxu0
    %v878 = vadd.f32 0.0, %v877
    %v879 = vpop.f32.mrf.mxu0
    %880 = vmatprep.mubr.f32.mxu0 0.0
    %881 = vmatmul.mubr.f32.gmra.mxu0 %v520
    %v882 = vpop.f32.mrf.mxu0
    %v883 = vadd.f32 0.0, %v882
    %v884 = vpop.f32.mrf.mxu0
    %885 = vmatprep.mubr.f32.mxu0 0.0
    %886 = vmatmul.mubr.f32.gmra.mxu0 %v523
    %v887 = vpop.f32.mrf.mxu0
    %v888 = vadd.f32 0.0, %v887
    %v889 = vpop.f32.mrf.mxu0
    %890 = vmatprep.mubr.f32.mxu0 0.0
    %891 = vmatmul.mubr.f32.gmra.mxu0 %v526
    %v892 = vpop.f32.mrf.mxu0
    %v893 = vadd.f32 0.0, %v892
    %v894 = vpop.f32.mrf.mxu0
    %895 = vmatprep.mubr.f32.mxu0 0.0
    %896 = vmatmul.mubr.f32.gmra.mxu0 %v529
    %v897 = vpop.f32.mrf.mxu0
    %v898 = vadd.f32 0.0, %v897
    %v899 = vpop.f32.mrf.mxu0
    %900 = vmatprep.mubr.f32.mxu0 0.0
    %901 = vmatmul.mubr.f32.gmra.mxu0 %v532
    %v902 = vpop.f32.mrf.mxu0
    %v903 = vadd.f32 0.0, %v902
    %v904 = vpop.f32.mrf.mxu0
    %905 = vdwg.mxu0
    %v906 = vpack.c.bf16 %v833, %v828
    %v907 = vpack.c.bf16 %v843, %v838
    %v908 = vpack.c.bf16 %v853, %v848
    %v909 = vpack.c.bf16 %v863, %v858
    %v910 = vpack.c.bf16 %v873, %v868
    %v911 = vpack.c.bf16 %v883, %v878
    %v912 = vpack.c.bf16 %v893, %v888
    %v913 = vpack.c.bf16 %v903, %v898
    %v922 = vunpack.c.l.b16 %v906
    %v923 = vunpack.c.h.b16 %v906
    %v924 = vunpack.c.l.b16 %v907
    %v925 = vunpack.c.h.b16 %v907
    %v926 = vunpack.c.l.b16 %v908
    %v927 = vunpack.c.h.b16 %v908
    %v928 = vunpack.c.l.b16 %v909
    %v929 = vunpack.c.h.b16 %v909
    %v930 = vunpack.c.l.b16 %v910
    %v931 = vunpack.c.h.b16 %v910
    %v932 = vunpack.c.l.b16 %v911
    %v933 = vunpack.c.h.b16 %v911
    %v934 = vunpack.c.l.b16 %v912
    %v935 = vunpack.c.h.b16 %v912
    %v936 = vunpack.c.l.b16 %v913
    %v937 = vunpack.c.h.b16 %v913
    %v938 = vpack.c.b16 %v922, %v922
    %v939 = vpack.c.b16 %v923, %v923
    %v940 = vpack.c.b16 %v924, %v924
    %v941 = vpack.c.b16 %v925, %v925
    %v942 = vpack.c.b16 %v926, %v926
    %v943 = vpack.c.b16 %v927, %v927
    %v944 = vpack.c.b16 %v928, %v928
    %v945 = vpack.c.b16 %v929, %v929
    %v946 = vpack.c.b16 %v930, %v930
    %v947 = vpack.c.b16 %v931, %v931
    %v948 = vpack.c.b16 %v932, %v932
    %v949 = vpack.c.b16 %v933, %v933
    %v950 = vpack.c.b16 %v934, %v934
    %v951 = vpack.c.b16 %v935, %v935
    %v952 = vpack.c.b16 %v936, %v936
    %v953 = vpack.c.b16 %v937, %v937
    %970 = vst [vmem:[#allocation8] sm:$0xf] %v938
    %971 = vst [vmem:[#allocation8 + $0x4] sm:$0xf] %v939
    %972 = vst [vmem:[#allocation8 + $0x8] sm:$0xf] %v940
    %973 = vst [vmem:[#allocation8 + $0xc] sm:$0xf] %v941
    %974 = vst [vmem:[#allocation8 + $0x10] sm:$0xf] %v942
    %975 = vst [vmem:[#allocation8 + $0x14] sm:$0xf] %v943
    %976 = vst [vmem:[#allocation8 + $0x18] sm:$0xf] %v944
    %977 = vst [vmem:[#allocation8 + $0x1c] sm:$0xf] %v945
    %978 = vst [vmem:[#allocation8 + $0x20] sm:$0xf] %v946
    %979 = vst [vmem:[#allocation8 + $0x24] sm:$0xf] %v947
    %980 = vst [vmem:[#allocation8 + $0x28] sm:$0xf] %v948
    %981 = vst [vmem:[#allocation8 + $0x2c] sm:$0xf] %v949
    %982 = vst [vmem:[#allocation8 + $0x30] sm:$0xf] %v950
    %983 = vst [vmem:[#allocation8 + $0x34] sm:$0xf] %v951
    %984 = vst [vmem:[#allocation8 + $0x38] sm:$0xf] %v952
    %985 = vst [vmem:[#allocation8 + $0x3c] sm:$0xf] %v953
    // Predicated region
    $region34: #{tpu_custom_call.1} parent=1 // pred_check
      _
    $region35: #{tpu_custom_call.1} parent=1 // pred_check_branch
      %987 = sbr.rel (0) target = $region37
    $region36: #{tpu_custom_call.1} parent=1 // pred_region
      %s989 = ssub.s32 1024, 1024
      %990 = vsyncadd [#allocation4], %s989
      %s991 = sshll.u32 [#allocation7], 4
      %s992 = int_to_ptr.vmem [resolvable:$true] %s991
      %997 = dma.vmem_to_hbm [thread:$0]  %s992, 1024, %s6, [#allocation4], 64, 64, 4
    $region37: #{tpu_custom_call.1} parent=1 // pred_fallthru
      _
    // Predicated region
    $region38: #{tpu_custom_call.1} parent=1 // pred_check
      _
    $region39: #{tpu_custom_call.1} parent=1 // pred_check_branch
      %999 = sbr.rel (0) target = $region41
    $region40: #{tpu_custom_call.1} parent=1 // pred_region
      %s1001 = ssub.s32 1024, 1024
      %1002 = vsyncadd [#allocation9], %s1001
      %s1003 = sshll.u32 [#allocation8], 4
      %s1004 = int_to_ptr.vmem [resolvable:$true] %s1003
      %1009 = dma.vmem_to_hbm [thread:$0]  %s1004, 1024, %s7, [#allocation9], 64, 64, 4
    $region41: #{tpu_custom_call.1} parent=1 // pred_fallthru
      _
    // Predicated region
    $region42: #{tpu_custom_call.1} parent=1 // pred_check
      _
    $region43: #{tpu_custom_call.1} parent=1 // pred_check_branch
      %1011 = sbr.rel (0) target = $region45
    $region44: #{tpu_custom_call.1} parent=1 // pred_region
      %1012 = dma.done [#allocation4], 1024
    $region45: #{tpu_custom_call.1} parent=1 // pred_fallthru
      _
    // Predicated region
    $region46: #{tpu_custom_call.1} parent=1 // pred_check
      _
    $region47: #{tpu_custom_call.1} parent=1 // pred_check_branch
      %1014 = sbr.rel (0) target = $region49
    $region48: #{tpu_custom_call.1} parent=1 // pred_region
      %1015 = dma.done [#allocation9], 1024
    $region49: #{tpu_custom_call.1} parent=1 // pred_fallthru
      _
    %1016 = vsyncpa [#allocation3], 1
    %1017 = vsyncpa [#allocation6], 1
    %1018 = vsyncpa [#allocation4], 1
    %1019 = vsyncpa [#allocation9], 1

</llo_original>
